<compile_context>
chip_gen: v5e
topology: v5e:2x2
jax: 0.10.0
libtpu: 0.0.40
codegen_flags: <defaults>
</compile_context>

<pallas_src>
import jax
import jax.numpy as jnp
from jax.experimental import pallas as pl
from jax.experimental.pallas import tpu as pltpu


def autoencoder_kernel(x_ref,
                       w1_ref, b1_ref,
                       w2_ref, b2_ref,
                       w3_ref, b3_ref,
                       w4_ref, b4_ref,
                       o_ref):
    """Fused forward: relu(relu(relu(relu(xW1+b1)W2+b2)W3+b3)W4+b4).

    x arrives f32 from HBM and is cast to bf16 on the VPU (free in this
    HBM-bound kernel); all MXU matmuls accumulate in f32 via
    preferred_element_type; bias-add / ReLU stay f32.
    """
    x = x_ref[...].astype(jnp.bfloat16)

    h = jnp.dot(x, w1_ref[...], preferred_element_type=jnp.float32)
    h = jnp.maximum(h + b1_ref[...], 0.0)

    h = jnp.dot(h.astype(jnp.bfloat16), w2_ref[...],
                preferred_element_type=jnp.float32)
    h = jnp.maximum(h + b2_ref[...], 0.0)

    h = jnp.dot(h.astype(jnp.bfloat16), w3_ref[...],
                preferred_element_type=jnp.float32)
    h = jnp.maximum(h + b3_ref[...], 0.0)

    h = jnp.dot(h.astype(jnp.bfloat16), w4_ref[...],
                preferred_element_type=jnp.float32)
    h = jnp.maximum(h + b4_ref[...], 0.0)

    o_ref[...] = h.astype(o_ref.dtype)


def _round_up(x, m):
    return (x + m - 1) // m * m


def _pick_batch_tile(B, batch_tile):
    """Batch tile: multiple of 8 (f32 sublanes), preferably 16 (bf16 packing),
    large enough to amortize per-grid-step overhead, and yielding >=2 tiles
    whenever possible so v7x's two TensorCores both get work."""
    if B <= 16:
        return _round_up(B, 8)
    TB = min(batch_tile, _round_up(B, 16))
    if TB >= B:
        # Whole batch would be one tile: split in two for the second v7x TC.
        TB = _round_up(pl.cdiv(B, 2), 16)
    return _round_up(TB, 8)


def autoencoder_forward(x, params, *, batch_tile=2048, out_dtype=jnp.float32):
    """x: (B, D) float32. params: bf16 weights (in, out), f32 biases (1, out)."""
    B, D = x.shape
    H = params["w1"].shape[1]  # 128

    TB = _pick_batch_tile(B, batch_tile)
    n_tiles = pl.cdiv(B, TB)   # ragged last tile: Pallas masks the writeback

    # x / output tiles march along the batch (double-buffered by the pipeline);
    # weights/biases map to block (0, 0) every step -> DMA'd once, VMEM-resident.
    act_spec = pl.BlockSpec((TB, D), lambda i: (i, 0))
    resident = lambda shape: pl.BlockSpec(shape, lambda i: (0, 0))

    out_bytes = jnp.dtype(out_dtype).itemsize
    flops = 2 * B * (2 * D * H + 2 * H * H)
    bytes_accessed = int(
        B * D * 4                       # f32 activations in
        + B * D * out_bytes             # reconstruction out
        + 2 * (2 * D * H + 2 * H * H)   # bf16 weights (paid once, resident)
        + 4 * (3 * H + D)               # f32 biases
    )

    return pl.pallas_call(
        autoencoder_kernel,
        out_shape=jax.ShapeDtypeStruct((B, D), out_dtype),
        grid_spec=pltpu.PrefetchScalarGridSpec(
            num_scalar_prefetch=0,
            grid=(n_tiles,),
            in_specs=[
                act_spec,                              # x batch tile (f32)
                resident((D, H)), resident((1, H)),    # encoder hidden
                resident((H, H)), resident((1, H)),    # encoder output
                resident((H, H)), resident((1, H)),    # decoder hidden
                resident((H, D)), resident((1, D)),    # decoder output
            ],
            out_specs=act_spec,
        ),
        compiler_params=pltpu.CompilerParams(
            dimension_semantics=("parallel",),     # shard batch tiles across TCs
            vmem_limit_bytes=48 * 1024 * 1024,     # TB=2048 uses ~15 MiB incl. temps
        ),
        cost_estimate=pl.CostEstimate(
            flops=flops, transcendentals=0, bytes_accessed=bytes_accessed),
    )(x,
      params["w1"], params["b1"],
      params["w2"], params["b2"],
      params["w3"], params["b3"],
      params["w4"], params["b4"])


def init_params(key, input_shape, hidden=128):
    """nn.Linear-style init. PyTorch stores W as (out, in); we pre-transpose to
    (in, out) for x @ W, then cast weights to bf16 (biases stay f32)."""
    keys = jax.random.split(key, 8)

    def linear(kw, kb, fan_in, fan_out):
        bound = 1.0 / jnp.sqrt(fan_in)
        w = jax.random.uniform(kw, (fan_in, fan_out), jnp.float32, -bound, bound)
        b = jax.random.uniform(kb, (1, fan_out), jnp.float32, -bound, bound)
        return w.astype(jnp.bfloat16), b

    w1, b1 = linear(keys[0], keys[1], input_shape, hidden)
    w2, b2 = linear(keys[2], keys[3], hidden, hidden)
    w3, b3 = linear(keys[4], keys[5], hidden, hidden)
    w4, b4 = linear(keys[6], keys[7], hidden, input_shape)
    return {"w1": w1, "b1": b1, "w2": w2, "b2": b2,
            "w3": w3, "b3": b3, "w4": w4, "b4": b4}


def autoencoder_ref(x, p):
    """Pure-JAX reference with the same bf16-dot / f32-accumulate math."""
    def layer(h, w, b):
        acc = jnp.dot(h.astype(jnp.bfloat16), w,
                      preferred_element_type=jnp.float32)
        return jnp.maximum(acc + b, 0.0)

    h = layer(x, p["w1"], p["b1"])
    h = layer(h, p["w2"], p["b2"])
    h = layer(h, p["w3"], p["b3"])
    h = layer(h, p["w4"], p["b4"])
    return h


if __name__ == "__main__":
    key = jax.random.PRNGKey(0)
    k_x, k_x2, k_p = jax.random.split(key, 3)

    input_shape = 256  # kwargs['input_shape']
    params = init_params(k_p, input_shape)

    # 1) Small single-tile check.
    batch = 8
    x = jax.random.normal(k_x, (batch, input_shape), dtype=jnp.float32)
    out = jax.block_until_ready(autoencoder_forward(x, params))
    ref = autoencoder_ref(x, params)
    assert out.shape == (batch, input_shape)
    assert out.dtype == jnp.float32
    assert jnp.allclose(out, ref, atol=1e-3, rtol=1e-3), "mismatch vs reference"

    # 2) Ragged batch with default tiling: TB=16 -> 2 tiles, last one partial
    #    (exercises the two-TC split path and the masked tail writeback).
    batch2 = 20
    x2 = jax.random.normal(k_x2, (batch2, input_shape), dtype=jnp.float32)
    ref2 = autoencoder_ref(x2, params)
    out2 = jax.block_until_ready(autoencoder_forward(x2, params))
    assert out2.shape == (batch2, input_shape)
    assert jnp.allclose(out2, ref2, atol=1e-3, rtol=1e-3), "mismatch (ragged default tile)"

    # 3) Same batch with a tiny explicit tile: 3 grid steps (8+8+4),
    #    resident weights reused across steps, ragged final block.
    out3 = jax.block_until_ready(autoencoder_forward(x2, params, batch_tile=8))
    assert out3.shape == (batch2, input_shape)
    assert jnp.allclose(out3, ref2, atol=1e-3, rtol=1e-3), "mismatch (multi-tile)"

    print("KERNEL_OK")
</pallas_src>

<mosaic_0001>
module attributes {stable_mosaic.version = 11 : i64} {
  func.func @autoencoder_kernel(%arg0: i32, %arg1: memref<8x256xf32, #tpu.memory_space<vmem>>, %arg2: memref<256x128xbf16, #tpu.memory_space<vmem>>, %arg3: memref<1x128xf32, #tpu.memory_space<vmem>>, %arg4: memref<128x128xbf16, #tpu.memory_space<vmem>>, %arg5: memref<1x128xf32, #tpu.memory_space<vmem>>, %arg6: memref<128x128xbf16, #tpu.memory_space<vmem>>, %arg7: memref<1x128xf32, #tpu.memory_space<vmem>>, %arg8: memref<128x256xbf16, #tpu.memory_space<vmem>>, %arg9: memref<1x256xf32, #tpu.memory_space<vmem>>, %arg10: memref<8x256xf32, #tpu.memory_space<vmem>>) attributes {dimension_semantics = [#tpu.dimension_semantics<parallel>], iteration_bounds = array<i64: 1>, scalar_prefetch = 0 : i64, scratch_operands = 0 : i64, tpu.core_type = #tpu.core_type<tc>, window_params = [{transform_indices = @transform_0, window_bounds = array<i64: 8, 256>}, {pipeline_mode = #tpu.pipeline_mode<synchronous>, transform_indices = @transform_1, window_bounds = array<i64: 256, 128>}, {pipeline_mode = #tpu.pipeline_mode<synchronous>, transform_indices = @transform_2, window_bounds = array<i64: 1, 128>}, {pipeline_mode = #tpu.pipeline_mode<synchronous>, transform_indices = @transform_3, window_bounds = array<i64: 128, 128>}, {pipeline_mode = #tpu.pipeline_mode<synchronous>, transform_indices = @transform_4, window_bounds = array<i64: 1, 128>}, {pipeline_mode = #tpu.pipeline_mode<synchronous>, transform_indices = @transform_5, window_bounds = array<i64: 128, 128>}, {pipeline_mode = #tpu.pipeline_mode<synchronous>, transform_indices = @transform_6, window_bounds = array<i64: 1, 128>}, {pipeline_mode = #tpu.pipeline_mode<synchronous>, transform_indices = @transform_7, window_bounds = array<i64: 128, 256>}, {pipeline_mode = #tpu.pipeline_mode<synchronous>, transform_indices = @transform_8, window_bounds = array<i64: 1, 256>}, {transform_indices = @transform_9, window_bounds = array<i64: 8, 256>}]} {
    %c0 = arith.constant 0 : index
    %c0_0 = arith.constant 0 : index
    %0 = vector.load %arg1[%c0, %c0_0] : memref<8x256xf32, #tpu.memory_space<vmem>>, vector<8x256xf32>
    %1 = arith.truncf %0 : vector<8x256xf32> to vector<8x256xbf16>
    %c0_1 = arith.constant 0 : index
    %c0_2 = arith.constant 0 : index
    %2 = vector.load %arg2[%c0_1, %c0_2] : memref<256x128xbf16, #tpu.memory_space<vmem>>, vector<256x128xbf16>
    %cst = arith.constant dense<0.000000e+00> : vector<8x128xf32>
    %3 = tpu.matmul %1, %2, %cst {dimension_numbers = #tpu.dot_dimension_numbers<[1], [0], [0], [1], [0, 0, 1, 1], [], []>} : vector<8x256xbf16>, vector<256x128xbf16>, vector<8x128xf32> -> vector<8x128xf32>
    %c0_3 = arith.constant 0 : index
    %c0_4 = arith.constant 0 : index
    %4 = vector.load %arg3[%c0_3, %c0_4] : memref<1x128xf32, #tpu.memory_space<vmem>>, vector<1x128xf32>
    %5 = vector.broadcast %4 : vector<1x128xf32> to vector<8x128xf32>
    %6 = arith.addf %3, %5 : vector<8x128xf32>
    %cst_5 = arith.constant 0.000000e+00 : f32
    %7 = vector.broadcast %cst_5 : f32 to vector<8x128xf32>
    %8 = arith.maximumf %6, %7 : vector<8x128xf32>
    %9 = arith.truncf %8 : vector<8x128xf32> to vector<8x128xbf16>
    %c0_6 = arith.constant 0 : index
    %c0_7 = arith.constant 0 : index
    %10 = vector.load %arg4[%c0_6, %c0_7] : memref<128x128xbf16, #tpu.memory_space<vmem>>, vector<128x128xbf16>
    %cst_8 = arith.constant dense<0.000000e+00> : vector<8x128xf32>
    %11 = tpu.matmul %9, %10, %cst_8 {dimension_numbers = #tpu.dot_dimension_numbers<[1], [0], [0], [1], [0, 0, 1, 1], [], []>} : vector<8x128xbf16>, vector<128x128xbf16>, vector<8x128xf32> -> vector<8x128xf32>
    %c0_9 = arith.constant 0 : index
    %c0_10 = arith.constant 0 : index
    %12 = vector.load %arg5[%c0_9, %c0_10] : memref<1x128xf32, #tpu.memory_space<vmem>>, vector<1x128xf32>
    %13 = vector.broadcast %12 : vector<1x128xf32> to vector<8x128xf32>
    %14 = arith.addf %11, %13 : vector<8x128xf32>
    %cst_11 = arith.constant 0.000000e+00 : f32
    %15 = vector.broadcast %cst_11 : f32 to vector<8x128xf32>
    %16 = arith.maximumf %14, %15 : vector<8x128xf32>
    %17 = arith.truncf %16 : vector<8x128xf32> to vector<8x128xbf16>
    %c0_12 = arith.constant 0 : index
    %c0_13 = arith.constant 0 : index
    %18 = vector.load %arg6[%c0_12, %c0_13] : memref<128x128xbf16, #tpu.memory_space<vmem>>, vector<128x128xbf16>
    %cst_14 = arith.constant dense<0.000000e+00> : vector<8x128xf32>
    %19 = tpu.matmul %17, %18, %cst_14 {dimension_numbers = #tpu.dot_dimension_numbers<[1], [0], [0], [1], [0, 0, 1, 1], [], []>} : vector<8x128xbf16>, vector<128x128xbf16>, vector<8x128xf32> -> vector<8x128xf32>
    %c0_15 = arith.constant 0 : index
    %c0_16 = arith.constant 0 : index
    %20 = vector.load %arg7[%c0_15, %c0_16] : memref<1x128xf32, #tpu.memory_space<vmem>>, vector<1x128xf32>
    %21 = vector.broadcast %20 : vector<1x128xf32> to vector<8x128xf32>
    %22 = arith.addf %19, %21 : vector<8x128xf32>
    %cst_17 = arith.constant 0.000000e+00 : f32
    %23 = vector.broadcast %cst_17 : f32 to vector<8x128xf32>
    %24 = arith.maximumf %22, %23 : vector<8x128xf32>
    %25 = arith.truncf %24 : vector<8x128xf32> to vector<8x128xbf16>
    %c0_18 = arith.constant 0 : index
    %c0_19 = arith.constant 0 : index
    %26 = vector.load %arg8[%c0_18, %c0_19] : memref<128x256xbf16, #tpu.memory_space<vmem>>, vector<128x256xbf16>
    %cst_20 = arith.constant dense<0.000000e+00> : vector<8x256xf32>
    %27 = tpu.matmul %25, %26, %cst_20 {dimension_numbers = #tpu.dot_dimension_numbers<[1], [0], [0], [1], [0, 0, 1, 1], [], []>} : vector<8x128xbf16>, vector<128x256xbf16>, vector<8x256xf32> -> vector<8x256xf32>
    %c0_21 = arith.constant 0 : index
    %c0_22 = arith.constant 0 : index
    %28 = vector.load %arg9[%c0_21, %c0_22] : memref<1x256xf32, #tpu.memory_space<vmem>>, vector<1x256xf32>
    %29 = vector.broadcast %28 : vector<1x256xf32> to vector<8x256xf32>
    %30 = arith.addf %27, %29 : vector<8x256xf32>
    %cst_23 = arith.constant 0.000000e+00 : f32
    %31 = vector.broadcast %cst_23 : f32 to vector<8x256xf32>
    %32 = arith.maximumf %30, %31 : vector<8x256xf32>
    %c0_24 = arith.constant 0 : index
    %c0_25 = arith.constant 0 : index
    %33 = vector.load %arg10[%c0_24, %c0_25] : memref<8x256xf32, #tpu.memory_space<vmem>>, vector<8x256xf32>
    tpu.vector_store %arg10[%c0_24, %c0_25], %32 {strides = array<i32>} : memref<8x256xf32, #tpu.memory_space<vmem>>, vector<8x256xf32>,
    return
  }
  func.func @transform_0(%arg0: i32) -> (i32, i32) {
    %c0_i32 = arith.constant 0 : i32
    %c0_i32_0 = arith.constant 0 : i32
    return %arg0, %c0_i32 : i32, i32
  }
  func.func @transform_1(%arg0: i32) -> (i32, i32) {
    %c0_i32 = arith.constant 0 : i32
    %c0_i32_0 = arith.constant 0 : i32
    %c0_i32_1 = arith.constant 0 : i32
    return %c0_i32, %c0_i32_0 : i32, i32
  }
  func.func @transform_2(%arg0: i32) -> (i32, i32) {
    %c0_i32 = arith.constant 0 : i32
    %c0_i32_0 = arith.constant 0 : i32
    %c0_i32_1 = arith.constant 0 : i32
    return %c0_i32, %c0_i32_0 : i32, i32
  }
  func.func @transform_3(%arg0: i32) -> (i32, i32) {
    %c0_i32 = arith.constant 0 : i32
    %c0_i32_0 = arith.constant 0 : i32
    %c0_i32_1 = arith.constant 0 : i32
    return %c0_i32, %c0_i32_0 : i32, i32
  }
  func.func @transform_4(%arg0: i32) -> (i32, i32) {
    %c0_i32 = arith.constant 0 : i32
    %c0_i32_0 = arith.constant 0 : i32
    %c0_i32_1 = arith.constant 0 : i32
    return %c0_i32, %c0_i32_0 : i32, i32
  }
  func.func @transform_5(%arg0: i32) -> (i32, i32) {
    %c0_i32 = arith.constant 0 : i32
    %c0_i32_0 = arith.constant 0 : i32
    %c0_i32_1 = arith.constant 0 : i32
    return %c0_i32, %c0_i32_0 : i32, i32
  }
  func.func @transform_6(%arg0: i32) -> (i32, i32) {
    %c0_i32 = arith.constant 0 : i32
    %c0_i32_0 = arith.constant 0 : i32
    %c0_i32_1 = arith.constant 0 : i32
    return %c0_i32, %c0_i32_0 : i32, i32
  }
  func.func @transform_7(%arg0: i32) -> (i32, i32) {
    %c0_i32 = arith.constant 0 : i32
    %c0_i32_0 = arith.constant 0 : i32
    %c0_i32_1 = arith.constant 0 : i32
    return %c0_i32, %c0_i32_0 : i32, i32
  }
  func.func @transform_8(%arg0: i32) -> (i32, i32) {
    %c0_i32 = arith.constant 0 : i32
    %c0_i32_0 = arith.constant 0 : i32
    %c0_i32_1 = arith.constant 0 : i32
    return %c0_i32, %c0_i32_0 : i32, i32
  }
  func.func @transform_9(%arg0: i32) -> (i32, i32) {
    %c0_i32 = arith.constant 0 : i32
    %c0_i32_0 = arith.constant 0 : i32
    return %arg0, %c0_i32 : i32, i32
  }
}

</mosaic_0001>

<llo_original>
// kernel: tpu_custom_call.1
$region0: #{tpu_custom_call.1}
  #allocation0 [shape = 'u32[]', space=smem, size = 0x4, offset = 0x4, fixed_abs, tag = 'smem constant byte address 0x4 - core index']
  #allocation1 [shape = 'u32[72,128]{1,0:T(1,128)}', space=vmem, size = 0x9000, scoped, tag = 'internal scratch']
  %s0 = inlined_call_operand.hbm [shape: f32[8,256], index: 0, kind: input, shape index: {}]
  %s1 = inlined_call_operand.hbm [shape: bf16[256,128], index: 1, kind: input, shape index: {}]
  %s2 = inlined_call_operand.vmem [shape: f32[1,128], index: 2, kind: input, shape index: {}]
  %s3 = inlined_call_operand.hbm [shape: bf16[128,128], index: 3, kind: input, shape index: {}]
  %s4 = inlined_call_operand.hbm [shape: f32[1,128], index: 4, kind: input, shape index: {}]
  %s5 = inlined_call_operand.hbm [shape: bf16[128,128], index: 5, kind: input, shape index: {}]
  %s6 = inlined_call_operand.vmem [shape: f32[1,128], index: 6, kind: input, shape index: {}]
  %s7 = inlined_call_operand.hbm [shape: bf16[128,256], index: 7, kind: input, shape index: {}]
  %s8 = inlined_call_operand.vmem [shape: f32[1,256], index: 8, kind: input, shape index: {}]
  %s9 = inlined_call_operand.hbm [shape: f32[8,256], index: 9, kind: output, shape index: {}]
  %s10 = sld [smem:[#allocation0]]
  $region70: #{tpu_custom_call.1} parent=0
    _
  %s12 = ssub.s32 1, %s10
  %s13 = scalar_select 0, %s12, %s10
  $region1: #{tpu_custom_call.1} parent=0
    #allocation2 [shape = 'u8[8192]{0}', space=vmem, size = 0x2000, scoped, tag = 'input window, operand 0, single buffered']
    #allocation3 [shape = 's32[1]{0}', space=sflag, size = 0x4, scoped, tag = 'scoped memory for tpu_custom_call.1']
    #allocation4 [shape = 's32[1]{0}', space=sflag, size = 0x4, scoped, tag = 'scoped memory for tpu_custom_call.1']
    #allocation5 [shape = 'u8[65536]{0}', space=vmem, size = 0x10000, scoped, tag = 'input window, operand 1, single buffered']
    #allocation6 [shape = 's32[1]{0}', space=sflag, size = 0x4, scoped, tag = 'scoped memory for tpu_custom_call.1']
    #allocation7 [shape = 'u8[32768]{0}', space=vmem, size = 0x8000, scoped, tag = 'input window, operand 3, single buffered']
    #allocation8 [shape = 'u8[512]{0}', space=vmem, size = 0x400, scoped, tag = 'input window, operand 4, single buffered']
    #allocation9 [shape = 's32[1]{0}', space=sflag, size = 0x4, scoped, tag = 'scoped memory for tpu_custom_call.1']
    #allocation10 [shape = 'u8[32768]{0}', space=vmem, size = 0x8000, scoped, tag = 'input window, operand 5, single buffered']
    #allocation11 [shape = 'u8[65536]{0}', space=vmem, size = 0x10000, scoped, tag = 'input window, operand 7, single buffered']
    #allocation12 [shape = 's32[1]{0}', space=sflag, size = 0x4, scoped, tag = 'scoped memory for tpu_custom_call.1']
    #allocation13 [shape = 'u8[8192]{0}', space=vmem, size = 0x2000, scoped, tag = 'output window, operand 0, single buffered']
    %14 = vsyncpa [#allocation3], 0
    %15 = vsyncpa [#allocation6], 0
    %16 = vsyncpa [#allocation9], 0
    %17 = vsyncpa [#allocation12], 0
    %18 = vsyncpa [#allocation4], 0
    // Predicated region
    $region2: #{tpu_custom_call.1} parent=1 // pred_check
      _
    $region3: #{tpu_custom_call.1} parent=1 // pred_check_branch
      %20 = sbr.rel (0) target = $region5
    $region4: #{tpu_custom_call.1} parent=1 // pred_region
      %22 = vsyncadd [#allocation3], 0
      %s24 = sshll.u32 %s0, 4
      %s25 = int_to_ptr.hbm [resolvable:$true] %s24
      %s26 = sshll.u32 [#allocation2], 4
      %s27 = int_to_ptr.vmem [resolvable:$true] %s26
      %29 = dma.hbm_to_vmem [thread:$0]  %s25, 256, %s27, [#allocation3]
    $region5: #{tpu_custom_call.1} parent=1 // pred_fallthru
      _
    // Predicated region
    $region6: #{tpu_custom_call.1} parent=1 // pred_check
      _
    $region7: #{tpu_custom_call.1} parent=1 // pred_check_branch
      %31 = sbr.rel (0) target = $region9
    $region8: #{tpu_custom_call.1} parent=1 // pred_region
      %33 = vsyncadd [#allocation6], 0
      %s34 = sshll.u32 %s1, 4
      %s35 = int_to_ptr.hbm [resolvable:$true] %s34
      %s36 = sshll.u32 [#allocation5], 4
      %s37 = int_to_ptr.vmem [resolvable:$true] %s36
      %42 = dma.hbm_to_vmem [thread:$0]  %s35, 2048, %s37, [#allocation6], 64, 64, 4
    $region9: #{tpu_custom_call.1} parent=1 // pred_fallthru
      _
    // Predicated region
    $region10: #{tpu_custom_call.1} parent=1 // pred_check
      _
    $region11: #{tpu_custom_call.1} parent=1 // pred_check_branch
      %44 = sbr.rel (0) target = $region13
    $region12: #{tpu_custom_call.1} parent=1 // pred_region
      _
    $region13: #{tpu_custom_call.1} parent=1 // pred_fallthru
      _
    // Predicated region
    $region14: #{tpu_custom_call.1} parent=1 // pred_check
      _
    $region15: #{tpu_custom_call.1} parent=1 // pred_check_branch
      %46 = sbr.rel (0) target = $region17
    $region16: #{tpu_custom_call.1} parent=1 // pred_region
      %48 = vsyncadd [#allocation6], 0
      %s49 = sshll.u32 %s3, 4
      %s50 = int_to_ptr.hbm [resolvable:$true] %s49
      %s51 = sshll.u32 [#allocation7], 4
      %s52 = int_to_ptr.vmem [resolvable:$true] %s51
      %57 = dma.hbm_to_vmem [thread:$0]  %s50, 1024, %s52, [#allocation6], 64, 64, 4
    $region17: #{tpu_custom_call.1} parent=1 // pred_fallthru
      _
    // Predicated region
    $region18: #{tpu_custom_call.1} parent=1 // pred_check
      _
    $region19: #{tpu_custom_call.1} parent=1 // pred_check_branch
      %59 = sbr.rel (0) target = $region21
    $region20: #{tpu_custom_call.1} parent=1 // pred_region
      %61 = vsyncadd [#allocation9], 0
      %s63 = sshll.u32 %s4, 4
      %s64 = int_to_ptr.hbm [resolvable:$true] %s63
      %s65 = sshll.u32 [#allocation8], 4
      %s66 = int_to_ptr.vmem [resolvable:$true] %s65
      %68 = dma.hbm_to_vmem [thread:$0]  %s64, 16, %s66, [#allocation9]
    $region21: #{tpu_custom_call.1} parent=1 // pred_fallthru
      _
    // Predicated region
    $region22: #{tpu_custom_call.1} parent=1 // pred_check
      _
    $region23: #{tpu_custom_call.1} parent=1 // pred_check_branch
      %70 = sbr.rel (0) target = $region25
    $region24: #{tpu_custom_call.1} parent=1 // pred_region
      %72 = vsyncadd [#allocation9], 0
      %s73 = sshll.u32 %s5, 4
      %s74 = int_to_ptr.hbm [resolvable:$true] %s73
      %s75 = sshll.u32 [#allocation10], 4
      %s76 = int_to_ptr.vmem [resolvable:$true] %s75
      %81 = dma.hbm_to_vmem [thread:$0]  %s74, 1024, %s76, [#allocation9], 64, 64, 4
    $region25: #{tpu_custom_call.1} parent=1 // pred_fallthru
      _
    // Predicated region
    $region26: #{tpu_custom_call.1} parent=1 // pred_check
      _
    $region27: #{tpu_custom_call.1} parent=1 // pred_check_branch
      %83 = sbr.rel (0) target = $region29
    $region28: #{tpu_custom_call.1} parent=1 // pred_region
      _
    $region29: #{tpu_custom_call.1} parent=1 // pred_fallthru
      _
    // Predicated region
    $region30: #{tpu_custom_call.1} parent=1 // pred_check
      _
    $region31: #{tpu_custom_call.1} parent=1 // pred_check_branch
      %85 = sbr.rel (0) target = $region33
    $region32: #{tpu_custom_call.1} parent=1 // pred_region
      %87 = vsyncadd [#allocation12], 0
      %s88 = sshll.u32 %s7, 4
      %s89 = int_to_ptr.hbm [resolvable:$true] %s88
      %s90 = sshll.u32 [#allocation11], 4
      %s91 = int_to_ptr.vmem [resolvable:$true] %s90
      %96 = dma.hbm_to_vmem [thread:$0]  %s89, 2048, %s91, [#allocation12], 128, 128, 8
    $region33: #{tpu_custom_call.1} parent=1 // pred_fallthru
      _
    // Predicated region
    $region34: #{tpu_custom_call.1} parent=1 // pred_check
      _
    $region35: #{tpu_custom_call.1} parent=1 // pred_check_branch
      %98 = sbr.rel (0) target = $region37
    $region36: #{tpu_custom_call.1} parent=1 // pred_region
      _
    $region37: #{tpu_custom_call.1} parent=1 // pred_fallthru
      _
    // Predicated region
    $region38: #{tpu_custom_call.1} parent=1 // pred_check
      _
    $region39: #{tpu_custom_call.1} parent=1 // pred_check_branch
      %100 = sbr.rel (0) target = $region41
    $region40: #{tpu_custom_call.1} parent=1 // pred_region
      %102 = dma.done [#allocation3], 256
    $region41: #{tpu_custom_call.1} parent=1 // pred_fallthru
      _
    // Predicated region
    $region42: #{tpu_custom_call.1} parent=1 // pred_check
      _
    $region43: #{tpu_custom_call.1} parent=1 // pred_check_branch
      %104 = sbr.rel (0) target = $region45
    $region44: #{tpu_custom_call.1} parent=1 // pred_region
      %106 = dma.done [#allocation6], 2048
    $region45: #{tpu_custom_call.1} parent=1 // pred_fallthru
      _
    // Predicated region
    $region46: #{tpu_custom_call.1} parent=1 // pred_check
      _
    $region47: #{tpu_custom_call.1} parent=1 // pred_check_branch
      %108 = sbr.rel (0) target = $region49
    $region48: #{tpu_custom_call.1} parent=1 // pred_region
      %110 = dma.done [#allocation6], 1024
    $region49: #{tpu_custom_call.1} parent=1 // pred_fallthru
      _
    // Predicated region
    $region50: #{tpu_custom_call.1} parent=1 // pred_check
      _
    $region51: #{tpu_custom_call.1} parent=1 // pred_check_branch
      %112 = sbr.rel (0) target = $region53
    $region52: #{tpu_custom_call.1} parent=1 // pred_region
      %114 = dma.done [#allocation9], 16
    $region53: #{tpu_custom_call.1} parent=1 // pred_fallthru
      _
    // Predicated region
    $region54: #{tpu_custom_call.1} parent=1 // pred_check
      _
    $region55: #{tpu_custom_call.1} parent=1 // pred_check_branch
      %116 = sbr.rel (0) target = $region57
    $region56: #{tpu_custom_call.1} parent=1 // pred_region
      %118 = dma.done [#allocation9], 1024
    $region57: #{tpu_custom_call.1} parent=1 // pred_fallthru
      _
    // Predicated region
    $region58: #{tpu_custom_call.1} parent=1 // pred_check
      _
    $region59: #{tpu_custom_call.1} parent=1 // pred_check_branch
      %120 = sbr.rel (0) target = $region61
    $region60: #{tpu_custom_call.1} parent=1 // pred_region
      %122 = dma.done [#allocation12], 2048
    $region61: #{tpu_custom_call.1} parent=1 // pred_fallthru
      _
    %v123 = vld [vmem:[#allocation2] sm:$0xff]
    %v124 = vld [vmem:[#allocation2 + $0x8] sm:$0xff]
    %v125 = vpack.c.bf16 %v123, %v123
    %v126 = vpack.c.bf16 %v124, %v124
    %v127 = vld [vmem:[#allocation5] sm:$0xf]
    %v128 = vld [vmem:[#allocation5 + $0x4] sm:$0xf]
    %v129 = vld [vmem:[#allocation5 + $0x8] sm:$0xf]
    %v130 = vld [vmem:[#allocation5 + $0xc] sm:$0xf]
    %v131 = vld [vmem:[#allocation5 + $0x10] sm:$0xf]
    %v132 = vld [vmem:[#allocation5 + $0x14] sm:$0xf]
    %v133 = vld [vmem:[#allocation5 + $0x18] sm:$0xf]
    %v134 = vld [vmem:[#allocation5 + $0x1c] sm:$0xf]
    %v135 = vld [vmem:[#allocation5 + $0x20] sm:$0xf]
    %v136 = vld [vmem:[#allocation5 + $0x24] sm:$0xf]
    %v137 = vld [vmem:[#allocation5 + $0x28] sm:$0xf]
    %v138 = vld [vmem:[#allocation5 + $0x2c] sm:$0xf]
    %v139 = vld [vmem:[#allocation5 + $0x30] sm:$0xf]
    %v140 = vld [vmem:[#allocation5 + $0x34] sm:$0xf]
    %v141 = vld [vmem:[#allocation5 + $0x38] sm:$0xf]
    %v142 = vld [vmem:[#allocation5 + $0x3c] sm:$0xf]
    %v143 = vld [vmem:[#allocation5 + $0x40] sm:$0xf]
    %v144 = vld [vmem:[#allocation5 + $0x44] sm:$0xf]
    %v145 = vld [vmem:[#allocation5 + $0x48] sm:$0xf]
    %v146 = vld [vmem:[#allocation5 + $0x4c] sm:$0xf]
    %v147 = vld [vmem:[#allocation5 + $0x50] sm:$0xf]
    %v148 = vld [vmem:[#allocation5 + $0x54] sm:$0xf]
    %v149 = vld [vmem:[#allocation5 + $0x58] sm:$0xf]
    %v150 = vld [vmem:[#allocation5 + $0x5c] sm:$0xf]
    %v151 = vld [vmem:[#allocation5 + $0x60] sm:$0xf]
    %v152 = vld [vmem:[#allocation5 + $0x64] sm:$0xf]
    %v153 = vld [vmem:[#allocation5 + $0x68] sm:$0xf]
    %v154 = vld [vmem:[#allocation5 + $0x6c] sm:$0xf]
    %v155 = vld [vmem:[#allocation5 + $0x70] sm:$0xf]
    %v156 = vld [vmem:[#allocation5 + $0x74] sm:$0xf]
    %v157 = vld [vmem:[#allocation5 + $0x78] sm:$0xf]
    %v158 = vld [vmem:[#allocation5 + $0x7c] sm:$0xf]
    %v159 = vld [vmem:[%s2] sm:$0x1]
    %v161 = vperm.slane %v159, 0
    %v195 = vunpack.c.l.b16 %v127
    %v196 = vunpack.c.l.b16 %v128
    %v197 = vunpack.c.l.b16 %v129
    %v198 = vunpack.c.l.b16 %v130
    %v199 = vunpack.c.l.b16 %v131
    %v200 = vunpack.c.l.b16 %v132
    %v201 = vunpack.c.l.b16 %v133
    %v202 = vunpack.c.l.b16 %v134
    %v203 = vunpack.c.l.b16 %v135
    %v204 = vunpack.c.l.b16 %v136
    %v205 = vunpack.c.l.b16 %v137
    %v206 = vunpack.c.l.b16 %v138
    %v207 = vunpack.c.l.b16 %v139
    %v208 = vunpack.c.l.b16 %v140
    %v209 = vunpack.c.l.b16 %v141
    %v210 = vunpack.c.l.b16 %v142
    %v211 = vunpack.c.l.b16 %v143
    %v212 = vunpack.c.l.b16 %v144
    %v213 = vunpack.c.l.b16 %v145
    %v214 = vunpack.c.l.b16 %v146
    %v215 = vunpack.c.l.b16 %v147
    %v216 = vunpack.c.l.b16 %v148
    %v217 = vunpack.c.l.b16 %v149
    %v218 = vunpack.c.l.b16 %v150
    %v219 = vunpack.c.l.b16 %v151
    %v220 = vunpack.c.l.b16 %v152
    %v221 = vunpack.c.l.b16 %v153
    %v222 = vunpack.c.l.b16 %v154
    %v223 = vunpack.c.l.b16 %v155
    %v224 = vunpack.c.l.b16 %v156
    %v225 = vunpack.c.l.b16 %v157
    %v226 = vunpack.c.l.b16 %v158
    %v227 = vpack.c.b16 %v196, %v195
    %v228 = vpack.c.b16 %v198, %v197
    %v229 = vpack.c.b16 %v200, %v199
    %v230 = vpack.c.b16 %v202, %v201
    %v231 = vpack.c.b16 %v204, %v203
    %v232 = vpack.c.b16 %v206, %v205
    %v233 = vpack.c.b16 %v208, %v207
    %v234 = vpack.c.b16 %v210, %v209
    %v235 = vpack.c.b16 %v212, %v211
    %v236 = vpack.c.b16 %v214, %v213
    %v237 = vpack.c.b16 %v216, %v215
    %v238 = vpack.c.b16 %v218, %v217
    %v239 = vpack.c.b16 %v220, %v219
    %v240 = vpack.c.b16 %v222, %v221
    %v241 = vpack.c.b16 %v224, %v223
    %v242 = vpack.c.b16 %v226, %v225
    %259 = vmatpush.bf16.msra.mxu0 %v234
    %260 = vmatpush.bf16.msra.mxu0 %v233
    %261 = vmatpush.bf16.msra.mxu0 %v232
    %262 = vmatpush.bf16.msra.mxu0 %v231
    %263 = vmatpush.bf16.msra.mxu0 %v230
    %264 = vmatpush.bf16.msra.mxu0 %v229
    %265 = vmatpush.bf16.msra.mxu0 %v228
    %266 = vmatpush.bf16.msra.mxu0 %v227
    %267 = vmatmul.bf16.gmra.mxu0 %v125
    %v268 = vpop.f32.mrf.mxu0
    %v269 = vadd.f32 %v161, %v268
    %v270 = vpop.f32.mrf.mxu0
    %271 = vdwg.mxu0
    %272 = vmatpush.bf16.msra.mxu0 %v242
    %273 = vmatpush.bf16.msra.mxu0 %v241
    %274 = vmatpush.bf16.msra.mxu0 %v240
    %275 = vmatpush.bf16.msra.mxu0 %v239
    %276 = vmatpush.bf16.msra.mxu0 %v238
    %277 = vmatpush.bf16.msra.mxu0 %v237
    %278 = vmatpush.bf16.msra.mxu0 %v236
    %279 = vmatpush.bf16.msra.mxu0 %v235
    %280 = vmatmul.bf16.gmra.mxu0 %v126
    %v281 = vpop.f32.mrf.mxu0
    %v282 = vadd.f32 %v269, %v281
    %v283 = vpop.f32.mrf.mxu0
    %284 = vdwg.mxu0
    %v285 = vmax.f32 %v282, 0.0
    %v286 = vpack.c.bf16 %v285, %v285
    %v287 = vld [vmem:[#allocation7] sm:$0xf]
    %v288 = vld [vmem:[#allocation7 + $0x4] sm:$0xf]
    %v289 = vld [vmem:[#allocation7 + $0x8] sm:$0xf]
    %v290 = vld [vmem:[#allocation7 + $0xc] sm:$0xf]
    %v291 = vld [vmem:[#allocation7 + $0x10] sm:$0xf]
    %v292 = vld [vmem:[#allocation7 + $0x14] sm:$0xf]
    %v293 = vld [vmem:[#allocation7 + $0x18] sm:$0xf]
    %v294 = vld [vmem:[#allocation7 + $0x1c] sm:$0xf]
    %v295 = vld [vmem:[#allocation7 + $0x20] sm:$0xf]
    %v296 = vld [vmem:[#allocation7 + $0x24] sm:$0xf]
    %v297 = vld [vmem:[#allocation7 + $0x28] sm:$0xf]
    %v298 = vld [vmem:[#allocation7 + $0x2c] sm:$0xf]
    %v299 = vld [vmem:[#allocation7 + $0x30] sm:$0xf]
    %v300 = vld [vmem:[#allocation7 + $0x34] sm:$0xf]
    %v301 = vld [vmem:[#allocation7 + $0x38] sm:$0xf]
    %v302 = vld [vmem:[#allocation7 + $0x3c] sm:$0xf]
    %v303 = vld [vmem:[#allocation8] sm:$0x1]
    %v305 = vperm.slane %v303, 0
    %v323 = vunpack.c.l.b16 %v287
    %v324 = vunpack.c.l.b16 %v288
    %v325 = vunpack.c.l.b16 %v289
    %v326 = vunpack.c.l.b16 %v290
    %v327 = vunpack.c.l.b16 %v291
    %v328 = vunpack.c.l.b16 %v292
    %v329 = vunpack.c.l.b16 %v293
    %v330 = vunpack.c.l.b16 %v294
    %v331 = vunpack.c.l.b16 %v295
    %v332 = vunpack.c.l.b16 %v296
    %v333 = vunpack.c.l.b16 %v297
    %v334 = vunpack.c.l.b16 %v298
    %v335 = vunpack.c.l.b16 %v299
    %v336 = vunpack.c.l.b16 %v300
    %v337 = vunpack.c.l.b16 %v301
    %v338 = vunpack.c.l.b16 %v302
    %v339 = vpack.c.b16 %v324, %v323
    %v340 = vpack.c.b16 %v326, %v325
    %v341 = vpack.c.b16 %v328, %v327
    %v342 = vpack.c.b16 %v330, %v329
    %v343 = vpack.c.b16 %v332, %v331
    %v344 = vpack.c.b16 %v334, %v333
    %v345 = vpack.c.b16 %v336, %v335
    %v346 = vpack.c.b16 %v338, %v337
    %355 = vmatpush.bf16.msra.mxu0 %v346
    %356 = vmatpush.bf16.msra.mxu0 %v345
    %357 = vmatpush.bf16.msra.mxu0 %v344
    %358 = vmatpush.bf16.msra.mxu0 %v343
    %359 = vmatpush.bf16.msra.mxu0 %v342
    %360 = vmatpush.bf16.msra.mxu0 %v341
    %361 = vmatpush.bf16.msra.mxu0 %v340
    %362 = vmatpush.bf16.msra.mxu0 %v339
    %363 = vmatmul.bf16.gmra.mxu0 %v286
    %v364 = vpop.f32.mrf.mxu0
    %v365 = vadd.f32 %v305, %v364
    %v366 = vpop.f32.mrf.mxu0
    %367 = vdwg.mxu0
    %v368 = vmax.f32 %v365, 0.0
    %v369 = vpack.c.bf16 %v368, %v368
    %v370 = vld [vmem:[#allocation10] sm:$0xf]
    %v371 = vld [vmem:[#allocation10 + $0x4] sm:$0xf]
    %v372 = vld [vmem:[#allocation10 + $0x8] sm:$0xf]
    %v373 = vld [vmem:[#allocation10 + $0xc] sm:$0xf]
    %v374 = vld [vmem:[#allocation10 + $0x10] sm:$0xf]
    %v375 = vld [vmem:[#allocation10 + $0x14] sm:$0xf]
    %v376 = vld [vmem:[#allocation10 + $0x18] sm:$0xf]
    %v377 = vld [vmem:[#allocation10 + $0x1c] sm:$0xf]
    %v378 = vld [vmem:[#allocation10 + $0x20] sm:$0xf]
    %v379 = vld [vmem:[#allocation10 + $0x24] sm:$0xf]
    %v380 = vld [vmem:[#allocation10 + $0x28] sm:$0xf]
    %v381 = vld [vmem:[#allocation10 + $0x2c] sm:$0xf]
    %v382 = vld [vmem:[#allocation10 + $0x30] sm:$0xf]
    %v383 = vld [vmem:[#allocation10 + $0x34] sm:$0xf]
    %v384 = vld [vmem:[#allocation10 + $0x38] sm:$0xf]
    %v385 = vld [vmem:[#allocation10 + $0x3c] sm:$0xf]
    %v386 = vld [vmem:[%s6] sm:$0x1]
    %v388 = vperm.slane %v386, 0
    %v406 = vunpack.c.l.b16 %v370
    %v407 = vunpack.c.l.b16 %v371
    %v408 = vunpack.c.l.b16 %v372
    %v409 = vunpack.c.l.b16 %v373
    %v410 = vunpack.c.l.b16 %v374
    %v411 = vunpack.c.l.b16 %v375
    %v412 = vunpack.c.l.b16 %v376
    %v413 = vunpack.c.l.b16 %v377
    %v414 = vunpack.c.l.b16 %v378
    %v415 = vunpack.c.l.b16 %v379
    %v416 = vunpack.c.l.b16 %v380
    %v417 = vunpack.c.l.b16 %v381
    %v418 = vunpack.c.l.b16 %v382
    %v419 = vunpack.c.l.b16 %v383
    %v420 = vunpack.c.l.b16 %v384
    %v421 = vunpack.c.l.b16 %v385
    %v422 = vpack.c.b16 %v407, %v406
    %v423 = vpack.c.b16 %v409, %v408
    %v424 = vpack.c.b16 %v411, %v410
    %v425 = vpack.c.b16 %v413, %v412
    %v426 = vpack.c.b16 %v415, %v414
    %v427 = vpack.c.b16 %v417, %v416
    %v428 = vpack.c.b16 %v419, %v418
    %v429 = vpack.c.b16 %v421, %v420
    %438 = vmatpush.bf16.msra.mxu0 %v429
    %439 = vmatpush.bf16.msra.mxu0 %v428
    %440 = vmatpush.bf16.msra.mxu0 %v427
    %441 = vmatpush.bf16.msra.mxu0 %v426
    %442 = vmatpush.bf16.msra.mxu0 %v425
    %443 = vmatpush.bf16.msra.mxu0 %v424
    %444 = vmatpush.bf16.msra.mxu0 %v423
    %445 = vmatpush.bf16.msra.mxu0 %v422
    %446 = vmatmul.bf16.gmra.mxu0 %v369
    %v447 = vpop.f32.mrf.mxu0
    %v448 = vadd.f32 %v388, %v447
    %v449 = vpop.f32.mrf.mxu0
    %450 = vdwg.mxu0
    %v451 = vmax.f32 %v448, 0.0
    %v452 = vpack.c.bf16 %v451, %v451
    %v453 = vld [vmem:[#allocation11] sm:$0xff]
    %v454 = vld [vmem:[#allocation11 + $0x8] sm:$0xff]
    %v455 = vld [vmem:[#allocation11 + $0x10] sm:$0xff]
    %v456 = vld [vmem:[#allocation11 + $0x18] sm:$0xff]
    %v457 = vld [vmem:[#allocation11 + $0x20] sm:$0xff]
    %v458 = vld [vmem:[#allocation11 + $0x28] sm:$0xff]
    %v459 = vld [vmem:[#allocation11 + $0x30] sm:$0xff]
    %v460 = vld [vmem:[#allocation11 + $0x38] sm:$0xff]
    %v461 = vld [vmem:[#allocation11 + $0x40] sm:$0xff]
    %v462 = vld [vmem:[#allocation11 + $0x48] sm:$0xff]
    %v463 = vld [vmem:[#allocation11 + $0x50] sm:$0xff]
    %v464 = vld [vmem:[#allocation11 + $0x58] sm:$0xff]
    %v465 = vld [vmem:[#allocation11 + $0x60] sm:$0xff]
    %v466 = vld [vmem:[#allocation11 + $0x68] sm:$0xff]
    %v467 = vld [vmem:[#allocation11 + $0x70] sm:$0xff]
    %v468 = vld [vmem:[#allocation11 + $0x78] sm:$0xff]
    %v469 = vld [vmem:[%s8] sm:$0x3]
    %v471 = vperm.slane %v469, 0
    %v472 = vperm.slane %v469, 1
    %v491 = vunpack.c.l.b16 %v453
    %v492 = vunpack.c.h.b16 %v453
    %v493 = vunpack.c.l.b16 %v454
    %v494 = vunpack.c.h.b16 %v454
    %v495 = vunpack.c.l.b16 %v455
    %v496 = vunpack.c.h.b16 %v455
    %v497 = vunpack.c.l.b16 %v456
    %v498 = vunpack.c.h.b16 %v456
    %v499 = vunpack.c.l.b16 %v457
    %v500 = vunpack.c.h.b16 %v457
    %v501 = vunpack.c.l.b16 %v458
    %v502 = vunpack.c.h.b16 %v458
    %v503 = vunpack.c.l.b16 %v459
    %v504 = vunpack.c.h.b16 %v459
    %v505 = vunpack.c.l.b16 %v460
    %v506 = vunpack.c.h.b16 %v460
    %v507 = vunpack.c.l.b16 %v461
    %v508 = vunpack.c.h.b16 %v461
    %v509 = vunpack.c.l.b16 %v462
    %v510 = vunpack.c.h.b16 %v462
    %v511 = vunpack.c.l.b16 %v463
    %v512 = vunpack.c.h.b16 %v463
    %v513 = vunpack.c.l.b16 %v464
    %v514 = vunpack.c.h.b16 %v464
    %v515 = vunpack.c.l.b16 %v465
    %v516 = vunpack.c.h.b16 %v465
    %v517 = vunpack.c.l.b16 %v466
    %v518 = vunpack.c.h.b16 %v466
    %v519 = vunpack.c.l.b16 %v467
    %v520 = vunpack.c.h.b16 %v467
    %v521 = vunpack.c.l.b16 %v468
    %v522 = vunpack.c.h.b16 %v468
    %v523 = vpack.c.b16 %v493, %v491
    %v524 = vpack.c.b16 %v494, %v492
    %v525 = vpack.c.b16 %v497, %v495
    %v526 = vpack.c.b16 %v498, %v496
    %v527 = vpack.c.b16 %v501, %v499
    %v528 = vpack.c.b16 %v502, %v500
    %v529 = vpack.c.b16 %v505, %v503
    %v530 = vpack.c.b16 %v506, %v504
    %v531 = vpack.c.b16 %v509, %v507
    %v532 = vpack.c.b16 %v510, %v508
    %v533 = vpack.c.b16 %v513, %v511
    %v534 = vpack.c.b16 %v514, %v512
    %v535 = vpack.c.b16 %v517, %v515
    %v536 = vpack.c.b16 %v518, %v516
    %v537 = vpack.c.b16 %v521, %v519
    %v538 = vpack.c.b16 %v522, %v520
    %555 = vmatpush.bf16.msra.mxu0 %v537
    %556 = vmatpush.bf16.msra.mxu0 %v535
    %557 = vmatpush.bf16.msra.mxu0 %v533
    %558 = vmatpush.bf16.msra.mxu0 %v531
    %559 = vmatpush.bf16.msra.mxu0 %v529
    %560 = vmatpush.bf16.msra.mxu0 %v527
    %561 = vmatpush.bf16.msra.mxu0 %v525
    %562 = vmatpush.bf16.msra.mxu0 %v523
    %563 = vmatmul.bf16.gmra.mxu0 %v452
    %v564 = vpop.f32.mrf.mxu0
    %v565 = vadd.f32 %v471, %v564
    %v566 = vpop.f32.mrf.mxu0
    %567 = vdwg.mxu0
    %568 = vmatpush.bf16.msra.mxu0 %v538
    %569 = vmatpush.bf16.msra.mxu0 %v536
    %570 = vmatpush.bf16.msra.mxu0 %v534
    %571 = vmatpush.bf16.msra.mxu0 %v532
    %572 = vmatpush.bf16.msra.mxu0 %v530
    %573 = vmatpush.bf16.msra.mxu0 %v528
    %574 = vmatpush.bf16.msra.mxu0 %v526
    %575 = vmatpush.bf16.msra.mxu0 %v524
    %576 = vmatmul.bf16.gmra.mxu0 %v452
    %v577 = vpop.f32.mrf.mxu0
    %v578 = vadd.f32 %v472, %v577
    %v579 = vpop.f32.mrf.mxu0
    %580 = vdwg.mxu0
    %v581 = vmax.f32 %v565, 0.0
    %v582 = vmax.f32 %v578, 0.0
    %583 = vst [vmem:[#allocation13] sm:$0xff] %v581
    %584 = vst [vmem:[#allocation13 + $0x8] sm:$0xff] %v582
    // Predicated region
    $region62: #{tpu_custom_call.1} parent=1 // pred_check
      _
    $region63: #{tpu_custom_call.1} parent=1 // pred_check_branch
      %586 = sbr.rel (0) target = $region65
    $region64: #{tpu_custom_call.1} parent=1 // pred_region
      %588 = vsyncadd [#allocation4], 0
      %s590 = sshll.u32 [#allocation13], 4
      %s591 = int_to_ptr.vmem [resolvable:$true] %s590
      %s592 = sshll.u32 %s9, 4
      %s593 = int_to_ptr.hbm [resolvable:$true] %s592
      %595 = dma.vmem_to_hbm [thread:$0]  %s591, 256, %s593, [#allocation4]
    $region65: #{tpu_custom_call.1} parent=1 // pred_fallthru
      _
    // Predicated region
    $region66: #{tpu_custom_call.1} parent=1 // pred_check
      _
    $region67: #{tpu_custom_call.1} parent=1 // pred_check_branch
      %597 = sbr.rel (0) target = $region69
    $region68: #{tpu_custom_call.1} parent=1 // pred_region
      %599 = dma.done [#allocation4], 256
    $region69: #{tpu_custom_call.1} parent=1 // pred_fallthru
      _
    %600 = vsyncpa [#allocation3], 1
    %601 = vsyncpa [#allocation6], 1
    %602 = vsyncpa [#allocation9], 1
    %603 = vsyncpa [#allocation12], 1
    %604 = vsyncpa [#allocation4], 1

</llo_original>
